<compile_context>
chip_gen: v5e
topology: v5e:2x2
jax: 0.10.0
libtpu: 0.0.40
codegen_flags: <defaults>
</compile_context>

<pallas_src>
import jax
import jax.numpy as jnp
from jax.experimental import pallas as pl
from jax.experimental.pallas import tpu as pltpu

_HIDDEN = 10        # logical hidden width of the MLP
_HIDDEN_PAD = 128   # hidden width padded to one full lane register


def _net_kernel(x_ref, w1_ref, b1_ref, w2_ref, out_ref):
    # x: (Bm, D)  w1: (D, 128)  b1: (1, 128)  w2: (128, 1)  out: (Bm, 1)
    # In-kernel cast (VPU, in VMEM) so the wrapper never adds an extra HBM
    # pass; no-op when dtypes already match.
    x = x_ref[...].astype(w1_ref.dtype)
    # Layer 1 on the MXU, f32 accumulate.
    h = jnp.dot(x, w1_ref[...], preferred_element_type=jnp.float32)
    h = jnp.tanh(h + b1_ref[...])                      # VPU add + EUP tanh, f32
    # Layer 2: canonical (Bm,128) @ (128,1) matmul -> (Bm, 1); no transpose of
    # h is possible here.  b2 is folded into lane _HIDDEN of b1/w2.
    y = jnp.dot(h, w2_ref[...], preferred_element_type=jnp.float32)
    out_ref[...] = y.astype(out_ref.dtype)


def prepare_net_params(w1, b1, w2, b2, *, input_dtype=jnp.float32):
    """One-time prep (outside the per-call hot path).

    w1: (10, D), b1: (10,), w2: (1, 10), b2: (1,)  -- PyTorch nn.Linear layout.
    Pads hidden 10 -> 128, lays w1 out as (D, 128) (no in-kernel transpose),
    stores w2 as a (128, 1) column, and folds b2 into the padded lane 10:
    b1_p[0, 10] = 30.0 so tanh -> exactly 1.0, times w2_p[10, 0] = b2.
    `input_dtype` controls the MXU input dtype for x/w1 (f32 or bf16).
    """
    H, D = w1.shape
    w1_p = jnp.zeros((D, _HIDDEN_PAD), input_dtype).at[:, :H].set(
        w1.T.astype(input_dtype))
    b1_p = jnp.zeros((1, _HIDDEN_PAD), jnp.float32).at[:, :H].set(
        b1.reshape(1, H).astype(jnp.float32))
    b1_p = b1_p.at[0, H].set(30.0)                       # tanh(30) == 1.0 in f32
    w2_p = jnp.zeros((_HIDDEN_PAD, 1), jnp.float32).at[:H, 0].set(
        w2.reshape(H).astype(jnp.float32))
    w2_p = w2_p.at[H, 0].set(b2.reshape(()).astype(jnp.float32))
    return w1_p, b1_p, w2_p


def _choose_block_b(B, D, itemsize):
    """Pick the batch tile size.

    Small B: one full-extent block.  Larger B: size by bytes, accounting for
    VMEM lane padding of the x block (D -> 128 lanes) and of the (Bm, 1)
    output block (1 -> 128 lanes), both double-buffered, keeping the streaming
    footprint ~10 MiB and the HBM-side x tile in the 2-4 MiB sweet spot, while
    guaranteeing >= 4 grid steps (megacore split + pipeline overlap).
    """
    if B <= 512:
        return B
    lane_d = max(128, -(-D // 128) * 128)
    per_row_vmem = 2 * lane_d * itemsize + 2 * 128 * 4          # x + out, dbl-buffered
    rows_vmem = (10 * 1024 * 1024) // per_row_vmem
    rows_hbm = (4 * 1024 * 1024) // max(D * itemsize, 1)        # logical x tile <= 4 MiB
    rows_split = -(-B // (4 * 128)) * 128                       # ~round_up(B/4, 128)
    rows = min(rows_vmem, rows_hbm, rows_split)
    return max(128, (rows // 128) * 128)


def net_forward(x, params, *, block_b=None):
    """x: (B, D). params from prepare_net_params. Returns (B, 1) f32.

    Pass x as bf16 (with bf16-prepped params) for real HBM-traffic savings;
    f32 x with bf16 params is also fine (cast happens in-kernel).
    """
    w1_p, b1_p, w2_p = params
    B, D = x.shape
    itemsize = jnp.dtype(x.dtype).itemsize
    w_itemsize = jnp.dtype(w1_p.dtype).itemsize

    Bm = block_b if block_b is not None else _choose_block_b(B, D, itemsize)
    Bm = min(Bm, B)
    n_blocks = pl.cdiv(B, Bm)

    # VMEM footprint (lane/sublane padded, double-buffered) -> scoped limit.
    lane_d = max(128, -(-D // 128) * 128)
    footprint = (2 * Bm * lane_d * itemsize                       # x blocks
                 + 2 * Bm * 128 * 4                               # (Bm,1) out pads to 128 lanes
                 + 2 * (-(-D // 8) * 8) * _HIDDEN_PAD * w_itemsize  # w1
                 + 2 * 8 * _HIDDEN_PAD * 4                        # b1
                 + 2 * _HIDDEN_PAD * 128 * 4)                     # w2 (128,1) pads to 128 lanes
    vmem_limit = int(min(max(32 * 1024 * 1024, footprint + 4 * 1024 * 1024),
                         56 * 1024 * 1024))

    cost = pl.CostEstimate(
        flops=int(2 * B * D * _HIDDEN_PAD + 2 * B * _HIDDEN_PAD),
        transcendentals=int(B * _HIDDEN_PAD),
        bytes_accessed=int(B * D * itemsize + B * 4
                           + D * _HIDDEN_PAD * w_itemsize
                           + _HIDDEN_PAD * 4 * 2),
    )

    return pl.pallas_call(
        _net_kernel,
        out_shape=jax.ShapeDtypeStruct((B, 1), jnp.float32),
        grid=(n_blocks,),
        in_specs=[
            pl.BlockSpec((Bm, D), lambda i: (i, 0)),              # x: streamed
            pl.BlockSpec((D, _HIDDEN_PAD), lambda i: (0, 0)),     # w1: resident
            pl.BlockSpec((1, _HIDDEN_PAD), lambda i: (0, 0)),     # b1 (+ folded b2)
            pl.BlockSpec((_HIDDEN_PAD, 1), lambda i: (0, 0)),     # w2 column
        ],
        out_specs=pl.BlockSpec((Bm, 1), lambda i: (i, 0)),
        compiler_params=pltpu.CompilerParams(
            dimension_semantics=("parallel",),
            vmem_limit_bytes=vmem_limit),
        cost_estimate=cost,
    )(x, w1_p, b1_p, w2_p)


def init_net_params(key, dim):
    """Deterministic init matching PyTorch nn.Linear default U[-1/sqrt(fan_in), +]."""
    k1, k2, k3, k4 = jax.random.split(key, 4)
    bound1 = 1.0 / jnp.sqrt(float(dim))
    w1 = jax.random.uniform(k1, (_HIDDEN, dim), jnp.float32, -bound1, bound1)
    b1 = jax.random.uniform(k2, (_HIDDEN,), jnp.float32, -bound1, bound1)
    bound2 = 1.0 / jnp.sqrt(float(_HIDDEN))
    w2 = jax.random.uniform(k3, (1, _HIDDEN), jnp.float32, -bound2, bound2)
    b2 = jax.random.uniform(k4, (1,), jnp.float32, -bound2, bound2)
    return w1, b1, w2, b2


def _reference(x, w1, b1, w2, b2):
    return jnp.tanh(x.astype(jnp.float32) @ w1.T + b1) @ w2.T + b2


if __name__ == "__main__":
    key = jax.random.PRNGKey(0)
    kx1, kx2, kx3, kp = jax.random.split(key, 4)

    D = 32
    w1, b1, w2, b2 = init_net_params(kp, D)
    params_f32 = prepare_net_params(w1, b1, w2, b2, input_dtype=jnp.float32)

    # 1) Small batch, f32 end to end (single full-extent block, grid of 1).
    x_small = jax.random.normal(kx1, (8, D), jnp.float32)
    out_small = jax.block_until_ready(net_forward(x_small, params_f32))
    ref_small = _reference(x_small, w1, b1, w2, b2)
    assert out_small.shape == (8, 1)
    assert jnp.allclose(out_small, ref_small, atol=1e-3, rtol=1e-3)

    # 2) Explicit tiling with an unpadded partial last block (grid of 3, Bm=128,
    #    last block has 44 valid rows -> masked stores, no host-side jnp.pad).
    x_mid = jax.random.normal(kx2, (300, D), jnp.float32)
    out_mid = jax.block_until_ready(net_forward(x_mid, params_f32, block_b=128))
    ref_mid = _reference(x_mid, w1, b1, w2, b2)
    assert out_mid.shape == (300, 1)
    assert jnp.allclose(out_mid, ref_mid, atol=1e-3, rtol=1e-3)

    # 3) Default heuristic path: B=1200 -> Bm=384, 4 grid steps, partial tail.
    x_big = jax.random.normal(kx3, (1200, D), jnp.float32)
    out_big = jax.block_until_ready(net_forward(x_big, params_f32))
    ref_big = _reference(x_big, w1, b1, w2, b2)
    assert out_big.shape == (1200, 1)
    assert jnp.allclose(out_big, ref_big, atol=1e-3, rtol=1e-3)

    # 4) bf16 MXU inputs for x/w1 (x passed as bf16 so the HBM saving is real),
    #    f32 accumulate/bias/tanh/layer-2.
    params_bf16 = prepare_net_params(w1, b1, w2, b2, input_dtype=jnp.bfloat16)
    out_bf16 = jax.block_until_ready(
        net_forward(x_small.astype(jnp.bfloat16), params_bf16))
    assert out_bf16.shape == (8, 1)
    assert jnp.allclose(out_bf16, ref_small, atol=5e-2, rtol=5e-2)

    print("KERNEL_OK")
</pallas_src>

<mosaic_0001>
module attributes {stable_mosaic.version = 11 : i64} {
  func.func @_net_kernel(%arg0: i32, %arg1: memref<8x32xf32, #tpu.memory_space<vmem>>, %arg2: memref<32x128xf32, #tpu.memory_space<vmem>>, %arg3: memref<1x128xf32, #tpu.memory_space<vmem>>, %arg4: memref<128x1xf32, #tpu.memory_space<vmem>>, %arg5: memref<8x1xf32, #tpu.memory_space<vmem>>) attributes {dimension_semantics = [#tpu.dimension_semantics<parallel>], iteration_bounds = array<i64: 1>, scalar_prefetch = 0 : i64, scratch_operands = 0 : i64, tpu.core_type = #tpu.core_type<tc>, window_params = [{transform_indices = @transform_0, window_bounds = array<i64: 8, 32>}, {pipeline_mode = #tpu.pipeline_mode<synchronous>, transform_indices = @transform_1, window_bounds = array<i64: 32, 128>}, {pipeline_mode = #tpu.pipeline_mode<synchronous>, transform_indices = @transform_2, window_bounds = array<i64: 1, 128>}, {pipeline_mode = #tpu.pipeline_mode<synchronous>, transform_indices = @transform_3, window_bounds = array<i64: 128, 1>}, {transform_indices = @transform_4, window_bounds = array<i64: 8, 1>}]} {
    %c0 = arith.constant 0 : index
    %c0_0 = arith.constant 0 : index
    %0 = vector.load %arg1[%c0, %c0_0] : memref<8x32xf32, #tpu.memory_space<vmem>>, vector<8x32xf32>
    %c0_1 = arith.constant 0 : index
    %c0_2 = arith.constant 0 : index
    %1 = vector.load %arg2[%c0_1, %c0_2] : memref<32x128xf32, #tpu.memory_space<vmem>>, vector<32x128xf32>
    %cst = arith.constant dense<0.000000e+00> : vector<8x128xf32>
    %2 = tpu.matmul %0, %1, %cst {dimension_numbers = #tpu.dot_dimension_numbers<[1], [0], [0], [1], [0, 0, 1, 1], [], []>} : vector<8x32xf32>, vector<32x128xf32>, vector<8x128xf32> -> vector<8x128xf32>
    %c0_3 = arith.constant 0 : index
    %c0_4 = arith.constant 0 : index
    %3 = vector.load %arg3[%c0_3, %c0_4] : memref<1x128xf32, #tpu.memory_space<vmem>>, vector<1x128xf32>
    %4 = vector.broadcast %3 : vector<1x128xf32> to vector<8x128xf32>
    %5 = arith.addf %2, %4 : vector<8x128xf32>
    %6 = math.tanh %5 : vector<8x128xf32>
    %c0_5 = arith.constant 0 : index
    %c0_6 = arith.constant 0 : index
    %7 = vector.load %arg4[%c0_5, %c0_6] : memref<128x1xf32, #tpu.memory_space<vmem>>, vector<128x1xf32>
    %cst_7 = arith.constant dense<0.000000e+00> : vector<8x1xf32>
    %8 = tpu.matmul %6, %7, %cst_7 {dimension_numbers = #tpu.dot_dimension_numbers<[1], [0], [0], [1], [0, 0, 1, 1], [], []>} : vector<8x128xf32>, vector<128x1xf32>, vector<8x1xf32> -> vector<8x1xf32>
    %c0_8 = arith.constant 0 : index
    %c0_9 = arith.constant 0 : index
    %9 = vector.load %arg5[%c0_8, %c0_9] : memref<8x1xf32, #tpu.memory_space<vmem>>, vector<8x1xf32>
    tpu.vector_store %arg5[%c0_8, %c0_9], %8 {strides = array<i32>} : memref<8x1xf32, #tpu.memory_space<vmem>>, vector<8x1xf32>,
    return
  }
  func.func @transform_0(%arg0: i32) -> (i32, i32) {
    %c0_i32 = arith.constant 0 : i32
    %c0_i32_0 = arith.constant 0 : i32
    return %arg0, %c0_i32 : i32, i32
  }
  func.func @transform_1(%arg0: i32) -> (i32, i32) {
    %c0_i32 = arith.constant 0 : i32
    %c0_i32_0 = arith.constant 0 : i32
    %c0_i32_1 = arith.constant 0 : i32
    return %c0_i32, %c0_i32_0 : i32, i32
  }
  func.func @transform_2(%arg0: i32) -> (i32, i32) {
    %c0_i32 = arith.constant 0 : i32
    %c0_i32_0 = arith.constant 0 : i32
    %c0_i32_1 = arith.constant 0 : i32
    return %c0_i32, %c0_i32_0 : i32, i32
  }
  func.func @transform_3(%arg0: i32) -> (i32, i32) {
    %c0_i32 = arith.constant 0 : i32
    %c0_i32_0 = arith.constant 0 : i32
    %c0_i32_1 = arith.constant 0 : i32
    return %c0_i32, %c0_i32_0 : i32, i32
  }
  func.func @transform_4(%arg0: i32) -> (i32, i32) {
    %c0_i32 = arith.constant 0 : i32
    %c0_i32_0 = arith.constant 0 : i32
    return %arg0, %c0_i32 : i32, i32
  }
}

</mosaic_0001>

<llo_original>
// kernel: tpu_custom_call.1
$region0: #{tpu_custom_call.1}
  #allocation0 [shape = 'u32[]', space=smem, size = 0x4, offset = 0x4, fixed_abs, tag = 'smem constant byte address 0x4 - core index']
  #allocation1 [shape = 'u32[72,128]{1,0:T(1,128)}', space=vmem, size = 0x9000, scoped, tag = 'internal scratch']
  %s0 = inlined_call_operand.vmem [shape: f32[8,32], index: 0, kind: input, shape index: {}]
  %s1 = inlined_call_operand.vmem [shape: f32[32,128], index: 1, kind: input, shape index: {}]
  %s2 = inlined_call_operand.vmem [shape: f32[1,128], index: 2, kind: input, shape index: {}]
  %s3 = inlined_call_operand.vmem [shape: f32[128,1], index: 3, kind: input, shape index: {}]
  %s4 = inlined_call_operand.vmem [shape: f32[8,1], index: 4, kind: output, shape index: {}]
  %s5 = sld [smem:[#allocation0]]
  $region26: #{tpu_custom_call.1} parent=0
    _
  %s7 = ssub.s32 1, %s5
  %s8 = scalar_select 0, %s7, %s5
  // Predicated region
  $region2: #{tpu_custom_call.1} parent=0 // pred_check
    _
  $region3: #{tpu_custom_call.1} parent=0 // pred_check_branch
    %10 = sbr.rel (0) target = $region5
  $region4: #{tpu_custom_call.1} parent=0 // pred_region
    _
  $region5: #{tpu_custom_call.1} parent=0 // pred_fallthru
    _
  // Predicated region
  $region6: #{tpu_custom_call.1} parent=0 // pred_check
    _
  $region7: #{tpu_custom_call.1} parent=0 // pred_check_branch
    %12 = sbr.rel (0) target = $region9
  $region8: #{tpu_custom_call.1} parent=0 // pred_region
    _
  $region9: #{tpu_custom_call.1} parent=0 // pred_fallthru
    _
  // Predicated region
  $region10: #{tpu_custom_call.1} parent=0 // pred_check
    _
  $region11: #{tpu_custom_call.1} parent=0 // pred_check_branch
    %14 = sbr.rel (0) target = $region13
  $region12: #{tpu_custom_call.1} parent=0 // pred_region
    _
  $region13: #{tpu_custom_call.1} parent=0 // pred_fallthru
    _
  // Predicated region
  $region14: #{tpu_custom_call.1} parent=0 // pred_check
    _
  $region15: #{tpu_custom_call.1} parent=0 // pred_check_branch
    %16 = sbr.rel (0) target = $region17
  $region16: #{tpu_custom_call.1} parent=0 // pred_region
    _
  $region17: #{tpu_custom_call.1} parent=0 // pred_fallthru
    _
  %v17 = vld [vmem:[%s0] sm:$0xff]
  %v18 = vld [vmem:[%s1] sm:$0xff]
  %v19 = vld [vmem:[%s1 + $0x8] sm:$0xff]
  %v20 = vld [vmem:[%s1 + $0x10] sm:$0xff]
  %v21 = vld [vmem:[%s1 + $0x18] sm:$0xff]
  %v22 = vld [vmem:[%s2] sm:$0x1]
  %v24 = vperm.slane %v22, 0
  %vm26 = vcmask 261120
  %v28 = vsel %vm26, %v17, 0
  %30 = vmatpush.msra.mxu0 0.0
  %31 = vmatpush.msra.mxu0 0.0
  %32 = vmatpush.msra.mxu0 0.0
  %33 = vmatpush.msra.mxu0 0.0
  %34 = vmatpush.msra.mxu0 0.0
  %35 = vmatpush.msra.mxu0 0.0
  %36 = vmatpush.msra.mxu0 0.0
  %37 = vmatpush.msra.mxu0 0.0
  %38 = vmatpush.msra.mxu0 0.0
  %39 = vmatpush.msra.mxu0 0.0
  %40 = vmatpush.msra.mxu0 0.0
  %41 = vmatpush.msra.mxu0 0.0
  %42 = vmatpush.msra.mxu0 %v21
  %43 = vmatpush.msra.mxu0 %v20
  %44 = vmatpush.msra.mxu0 %v19
  %45 = vmatpush.msra.mxu0 %v18
  %46 = vmatmul.f32.gmra.mxu0 %v28
  %v47 = vpop.f32.mrf.mxu0
  %v48 = vadd.f32 %v24, %v47
  %49 = vdwg.mxu0
  %v50 = vtanh.pop %v48
  %v51 = vld [vmem:[%s3] sm:$0xff]
  %v52 = vld [vmem:[%s3 + $0x8] sm:$0xff]
  %v53 = vld [vmem:[%s3 + $0x10] sm:$0xff]
  %v54 = vld [vmem:[%s3 + $0x18] sm:$0xff]
  %v55 = vld [vmem:[%s3 + $0x20] sm:$0xff]
  %v56 = vld [vmem:[%s3 + $0x28] sm:$0xff]
  %v57 = vld [vmem:[%s3 + $0x30] sm:$0xff]
  %v58 = vld [vmem:[%s3 + $0x38] sm:$0xff]
  %v59 = vld [vmem:[%s3 + $0x40] sm:$0xff]
  %v60 = vld [vmem:[%s3 + $0x48] sm:$0xff]
  %v61 = vld [vmem:[%s3 + $0x50] sm:$0xff]
  %v62 = vld [vmem:[%s3 + $0x58] sm:$0xff]
  %v63 = vld [vmem:[%s3 + $0x60] sm:$0xff]
  %v64 = vld [vmem:[%s3 + $0x68] sm:$0xff]
  %v65 = vld [vmem:[%s3 + $0x70] sm:$0xff]
  %v66 = vld [vmem:[%s3 + $0x78] sm:$0xff]
  %67 = vmatpush.msra.mxu0 %v66
  %68 = vmatpush.msra.mxu0 %v65
  %69 = vmatpush.msra.mxu0 %v64
  %70 = vmatpush.msra.mxu0 %v63
  %71 = vmatpush.msra.mxu0 %v62
  %72 = vmatpush.msra.mxu0 %v61
  %73 = vmatpush.msra.mxu0 %v60
  %74 = vmatpush.msra.mxu0 %v59
  %75 = vmatpush.msra.mxu0 %v58
  %76 = vmatpush.msra.mxu0 %v57
  %77 = vmatpush.msra.mxu0 %v56
  %78 = vmatpush.msra.mxu0 %v55
  %79 = vmatpush.msra.mxu0 %v54
  %80 = vmatpush.msra.mxu0 %v53
  %81 = vmatpush.msra.mxu0 %v52
  %82 = vmatpush.msra.mxu0 %v51
  %83 = vmatmul.f32.gmra.mxu0 %v50
  %v84 = vpop.f32.mrf.mxu0
  %v85 = vadd.f32 0.0, %v84
  %86 = vdwg.mxu0
  %vm87 = vcmask 7168
  %88 = vst.msk [vmem:[%s4] sm:$0xff] %vm87, %v85
  // Predicated region
  $region18: #{tpu_custom_call.1} parent=0 // pred_check
    _
  $region19: #{tpu_custom_call.1} parent=0 // pred_check_branch
    %90 = sbr.rel (0) target = $region21
  $region20: #{tpu_custom_call.1} parent=0 // pred_region
    _
  $region21: #{tpu_custom_call.1} parent=0 // pred_fallthru
    _
  // Predicated region
  $region22: #{tpu_custom_call.1} parent=0 // pred_check
    _
  $region23: #{tpu_custom_call.1} parent=0 // pred_check_branch
    %92 = sbr.rel (0) target = $region25
  $region24: #{tpu_custom_call.1} parent=0 // pred_region
    _
  $region25: #{tpu_custom_call.1} parent=0 // pred_fallthru
    _

</llo_original>
